<compile_context>
chip_gen: v5e
topology: v5e:2x2
jax: 0.10.0
libtpu: 0.0.40
codegen_flags: <defaults>
</compile_context>

<pallas_src>
import functools
import math

import jax
import jax.numpy as jnp
from jax import lax
from jax.experimental import pallas as pl
from jax.experimental.pallas import tpu as pltpu

_NEG_BIG = -1e30  # exp(_NEG_BIG - m) == 0.0 exactly for finite m

_VMEM_LIMIT_BYTES = 48 * 1024 * 1024   # requested scoped VMEM (< v7x 64 MiB physical)
_VMEM_BUDGET_BYTES = 40 * 1024 * 1024  # planning budget used to pick batch_block


def _head_kernel(x_ref, w_ref, o_ref, *, approx_recip):
    BB, T, C = x_ref.shape          # batch-block, seq, embed
    H3 = w_ref.shape[-1]
    Hp = H3 // 3                    # lane-padded head size (multiple of 128)
    in_dt = x_ref.dtype             # MXU operand dtype (bf16 by default)

    # ---- fused QKV projection: one fat (BB*T, C) @ (C, 3*Hp) MXU matmul ------
    x2 = x_ref[...].reshape(BB * T, C)
    qkv = jnp.dot(x2, w_ref[...], preferred_element_type=jnp.float32)
    if in_dt != jnp.float32:
        qkv = qkv.astype(in_dt)     # single cast of the whole slab
    qkv = qkv.reshape(BB, T, H3)
    # 128-lane-aligned splits (Hp % 128 == 0): no mid-vreg lane slicing.
    q = qkv[:, :, 0:Hp]
    k = qkv[:, :, Hp:2 * Hp]
    v = qkv[:, :, 2 * Hp:3 * Hp]

    # ---- scores (1/sqrt(C) already folded into Wq); no explicit k.T ----------
    scores = jnp.einsum("bqd,bkd->bqk", q, k,
                        preferred_element_type=jnp.float32)       # (BB, T, T)

    # ---- causal mask: one (T,T) compare broadcast over BB --------------------
    row = lax.broadcasted_iota(jnp.int32, (T, T), 0)
    col = lax.broadcasted_iota(jnp.int32, (T, T), 1)
    causal = col <= row
    scores = jnp.where(causal[None, :, :], scores, _NEG_BIG)

    # ---- numerically-stable softmax in f32 -----------------------------------
    m = jnp.max(scores, axis=-1, keepdims=True)
    p = jnp.exp(scores - m)
    l = jnp.sum(p, axis=-1, keepdims=True)
    wei = p * pl.reciprocal(l, approx=approx_recip)

    # TODO(synk): training-mode dropout on `wei` not implemented (eval/identity);
    # would use pltpu.prng_seed + pltpu.stateful_bernoulli.

    # ---- PV (output lane-padded to Hp -> lane-dense store) -------------------
    out = jnp.einsum("bqk,bkd->bqd", wei.astype(in_dt), v,
                     preferred_element_type=jnp.float32)          # (BB, T, Hp)
    o_ref[...] = out.astype(o_ref.dtype)

    # TODO(synk): for realistic block_size (T=256+) with large BB, add a KV-tile
    # loop with online softmax instead of materializing the full (BB,T,T) scores.


def _vmem_bytes_estimate(bb, T, C, H_pad, in_bytes, out_bytes):
    x_blk = 2 * bb * T * C * in_bytes            # double-buffered x block
    o_blk = 2 * bb * T * H_pad * out_bytes       # double-buffered out block
    w_res = 2 * C * 3 * H_pad * in_bytes         # resident fused weight
    interm = (bb * T * 3 * H_pad * 4             # qkv (f32)
              + 2 * bb * T * T * 4               # scores + p (f32)
              + bb * T * H_pad * 4)              # PV result (f32)
    return int(1.5 * (x_blk + o_blk + w_res + interm))


def _default_batch_block(B, T, C, H_pad, in_bytes, out_bytes):
    divs = [d for d in range(B, 0, -1) if B % d == 0]
    fitting = [d for d in divs
               if _vmem_bytes_estimate(d, T, C, H_pad, in_bytes, out_bytes)
               <= _VMEM_BUDGET_BYTES]
    if not fitting:
        fitting = [1]
    bb = fitting[0]  # largest VMEM-fitting block -> fat MXU M dim, few grid steps
    # Prefer >= 2 grid steps so v7x's two TensorCores both get work, as long as
    # the projection M dim (bb*T) stays >= 256 rows, or the problem is tiny anyway.
    if B // bb < 2 and B >= 2:
        for d in fitting:
            if B // d >= 2 and (d * T >= 256 or B * T < 512):
                bb = d
                break
    return bb


def fuse_head_weights(wq, wk, wv, *, compute_dtype=jnp.bfloat16):
    """Fuse / scale / lane-pad the projection weights (do this once at init).

    wq/wk/wv: (C, H) nn.Linear weights, pre-transposed.  Returns (w_qkv, H)
    where w_qkv is (C, 3*H_pad) with H_pad = round_up(H, 128) and the 1/sqrt(C)
    attention scale folded into the query weight.
    """
    C, H = wq.shape
    H_pad = max(128, ((H + 127) // 128) * 128)
    dt = compute_dtype if compute_dtype is not None else wq.dtype
    wq_scaled = wq * (1.0 / math.sqrt(C))  # fold the attention scale into Wq

    def pad(w):
        return jnp.pad(w, ((0, 0), (0, H_pad - H)))

    w_qkv = jnp.concatenate([pad(wq_scaled), pad(wk), pad(wv)], axis=-1).astype(dt)
    return w_qkv, H


def head_forward_fused(x, w_qkv, head_size, *, batch_block=None,
                       vmem_limit_bytes=_VMEM_LIMIT_BYTES):
    """Attention forward given a pre-fused/padded weight from fuse_head_weights."""
    B, T, C = x.shape
    H3 = w_qkv.shape[-1]
    H_pad = H3 // 3
    out_dtype = x.dtype
    in_dt = w_qkv.dtype
    x = x.astype(in_dt)

    if batch_block is None:
        batch_block = _default_batch_block(
            B, T, C, H_pad,
            jnp.dtype(in_dt).itemsize, jnp.dtype(out_dtype).itemsize)
    assert B % batch_block == 0, "batch_block must divide B"
    BB = batch_block

    kernel = functools.partial(_head_kernel,
                               approx_recip=(in_dt != jnp.float32))
    out_pad = pl.pallas_call(
        kernel,
        out_shape=jax.ShapeDtypeStruct((B, T, H_pad), out_dtype),
        grid=(B // BB,),
        in_specs=[
            pl.BlockSpec((BB, T, C), lambda b: (b, 0, 0)),
            # Constant block index -> fused weight stays resident in VMEM.
            pl.BlockSpec((C, H3), lambda b: (0, 0)),
        ],
        out_specs=pl.BlockSpec((BB, T, H_pad), lambda b: (b, 0, 0)),
        compiler_params=pltpu.CompilerParams(
            dimension_semantics=("parallel",),
            vmem_limit_bytes=vmem_limit_bytes,
        ),
    )(x, w_qkv)
    # Drop the lane padding back to the true head size.
    return out_pad[..., :head_size]


def head_forward(x, wq, wk, wv, *, compute_dtype=jnp.bfloat16, batch_block=None):
    """Single-head causal self-attention forward.

    x: (B, T, C); wq/wk/wv: (C, H)  (nn.Linear weights, pre-transposed).
    compute_dtype: MXU-operand / streaming dtype (default bf16 on every TPU
      generation; softmax stays f32).  None -> weight dtype.
    """
    w_qkv, H = fuse_head_weights(wq, wk, wv, compute_dtype=compute_dtype)
    return head_forward_fused(x, w_qkv, H, batch_block=batch_block)


def head_reference(x, wq, wk, wv):
    """Pure-JAX reference matching the PyTorch forward (eval mode)."""
    B, T, C = x.shape
    q = x @ wq
    k = x @ wk
    v = x @ wv
    wei = (q @ jnp.swapaxes(k, -2, -1)) / math.sqrt(C)
    mask = jnp.tril(jnp.ones((T, T), dtype=bool))
    wei = jnp.where(mask, wei, -jnp.inf)
    wei = jax.nn.softmax(wei, axis=-1)
    return wei @ v


if __name__ == "__main__":
    n_embd = 512       # C (module constant)
    head_size = 64     # H
    B, T = 2, 8        # small batch / sequence (T <= block_size)

    key = jax.random.PRNGKey(0)
    kx, kq, kk, kv = jax.random.split(key, 4)

    x = jax.random.normal(kx, (B, T, n_embd), dtype=jnp.float32)
    # nn.Linear(n_embd, head_size) weight is (head_size, n_embd); store transposed.
    init_scale = 1.0 / math.sqrt(n_embd)
    wq = jax.random.uniform(kq, (n_embd, head_size), jnp.float32, -init_scale, init_scale)
    wk = jax.random.uniform(kk, (n_embd, head_size), jnp.float32, -init_scale, init_scale)
    wv = jax.random.uniform(kv, (n_embd, head_size), jnp.float32, -init_scale, init_scale)

    ref = head_reference(x, wq, wk, wv)

    # Default path: bf16 MXU operands / streaming, f32 softmax & accumulation.
    out = jax.block_until_ready(head_forward(x, wq, wk, wv))
    assert out.shape == (B, T, head_size)
    assert jnp.allclose(out, ref, atol=3e-2, rtol=3e-2), "bf16 path mismatch vs reference"

    # Full-f32 path (exact reciprocal) for tight validation.
    out_f32 = jax.block_until_ready(
        head_forward(x, wq, wk, wv, compute_dtype=jnp.float32))
    assert out_f32.shape == (B, T, head_size)
    assert jnp.allclose(out_f32, ref, atol=2e-3, rtol=2e-3), "f32 path mismatch vs reference"

    # Pre-fused-weight entry point (weight prep done once at init).
    w_qkv, H = fuse_head_weights(wq, wk, wv, compute_dtype=jnp.bfloat16)
    out_fused = jax.block_until_ready(head_forward_fused(x, w_qkv, H))
    assert jnp.allclose(out_fused, ref, atol=3e-2, rtol=3e-2), "fused-weight path mismatch"

    print("KERNEL_OK")
</pallas_src>

<mosaic_0001>
module attributes {stable_mosaic.version = 11 : i64} {
  func.func @_head_kernel(%arg0: i32, %arg1: memref<1x8x512xbf16, #tpu.memory_space<vmem>>, %arg2: memref<512x384xbf16, #tpu.memory_space<vmem>>, %arg3: memref<1x8x128xf32, #tpu.memory_space<vmem>>) attributes {dimension_semantics = [#tpu.dimension_semantics<parallel>], iteration_bounds = array<i64: 2>, scalar_prefetch = 0 : i64, scratch_operands = 0 : i64, tpu.core_type = #tpu.core_type<tc>, window_params = [{transform_indices = @transform_0, window_bounds = array<i64: 1, 8, 512>}, {pipeline_mode = #tpu.pipeline_mode<synchronous>, transform_indices = @transform_1, window_bounds = array<i64: 512, 384>}, {transform_indices = @transform_2, window_bounds = array<i64: 1, 8, 128>}]} {
    %c0 = arith.constant 0 : index
    %c0_0 = arith.constant 0 : index
    %c0_1 = arith.constant 0 : index
    %0 = vector.load %arg1[%c0, %c0_0, %c0_1] : memref<1x8x512xbf16, #tpu.memory_space<vmem>>, vector<1x8x512xbf16>
    %1 = vector.shape_cast %0 : vector<1x8x512xbf16> to vector<8x512xbf16>
    %c0_2 = arith.constant 0 : index
    %c0_3 = arith.constant 0 : index
    %2 = vector.load %arg2[%c0_2, %c0_3] : memref<512x384xbf16, #tpu.memory_space<vmem>>, vector<512x384xbf16>
    %cst = arith.constant dense<0.000000e+00> : vector<8x384xf32>
    %3 = tpu.matmul %1, %2, %cst {dimension_numbers = #tpu.dot_dimension_numbers<[1], [0], [0], [1], [0, 0, 1, 1], [], []>} : vector<8x512xbf16>, vector<512x384xbf16>, vector<8x384xf32> -> vector<8x384xf32>
    %4 = arith.truncf %3 : vector<8x384xf32> to vector<8x384xbf16>
    %5 = vector.shape_cast %4 : vector<8x384xbf16> to vector<1x8x384xbf16>
    %6 = vector.extract_strided_slice %5 {offsets = [0, 0, 0], sizes = [1, 8, 128], strides = [1, 1, 1]} : vector<1x8x384xbf16> to vector<1x8x128xbf16>
    %7 = vector.extract_strided_slice %5 {offsets = [0, 0, 128], sizes = [1, 8, 128], strides = [1, 1, 1]} : vector<1x8x384xbf16> to vector<1x8x128xbf16>
    %8 = vector.extract_strided_slice %5 {offsets = [0, 0, 256], sizes = [1, 8, 128], strides = [1, 1, 1]} : vector<1x8x384xbf16> to vector<1x8x128xbf16>
    "tpu.trace_start"() <{level = 10 : i32, message = "bqd,bkd->bqk"}> : () -> ()
    %cst_4 = arith.constant dense<0.000000e+00> : vector<1x8x8xf32>
    %9 = tpu.matmul %6, %7, %cst_4 {dimension_numbers = #tpu.dot_dimension_numbers<[2], [2], [1], [1], [0, 0, 0, 1, 1, 1], [0], [0]>} : vector<1x8x128xbf16>, vector<1x8x128xbf16>, vector<1x8x8xf32> -> vector<1x8x8xf32>
    "tpu.trace_stop"() : () -> ()
    %10 = tpu.iota {dimensions = array<i32: 0>} : vector<8x8xi32>
    %11 = tpu.iota {dimensions = array<i32: 1>} : vector<8x8xi32>
    %12 = arith.cmpi sle, %11, %10 : vector<8x8xi32>
    %13 = vector.shape_cast %12 : vector<8x8xi1> to vector<1x8x8xi1>
    %cst_5 = arith.constant -1.000000e+30 : f32
    %14 = vector.broadcast %cst_5 : f32 to vector<1x8x8xf32>
    %15 = arith.select %13, %9, %14 : vector<1x8x8xi1>, vector<1x8x8xf32>
    %cst_6 = arith.constant dense<0xFF800000> : vector<1x8xf32>
    %16 = vector.multi_reduction <maximumf>, %15, %cst_6 [2] : vector<1x8x8xf32> to vector<1x8xf32>
    %17 = vector.shape_cast %16 : vector<1x8xf32> to vector<1x8x1xf32>
    %18 = vector.broadcast %17 : vector<1x8x1xf32> to vector<1x8x8xf32>
    %19 = arith.subf %15, %18 : vector<1x8x8xf32>
    %20 = math.exp %19 : vector<1x8x8xf32>
    %cst_7 = arith.constant dense<0.000000e+00> : vector<1x8xf32>
    %21 = vector.multi_reduction <add>, %20, %cst_7 [2] : vector<1x8x8xf32> to vector<1x8xf32>
    %22 = vector.shape_cast %21 : vector<1x8xf32> to vector<1x8x1xf32>
    %23 = tpu.reciprocal %22 {approx = true} : vector<1x8x1xf32> -> vector<1x8x1xf32>
    %24 = vector.broadcast %23 : vector<1x8x1xf32> to vector<1x8x8xf32>
    %25 = arith.mulf %20, %24 : vector<1x8x8xf32>
    %26 = arith.truncf %25 : vector<1x8x8xf32> to vector<1x8x8xbf16>
    "tpu.trace_start"() <{level = 10 : i32, message = "bqk,bkd->bqd"}> : () -> ()
    %cst_8 = arith.constant dense<0.000000e+00> : vector<1x8x128xf32>
    %27 = tpu.matmul %26, %8, %cst_8 {dimension_numbers = #tpu.dot_dimension_numbers<[2], [1], [1], [2], [0, 0, 0, 1, 1, 2], [0], [0]>} : vector<1x8x8xbf16>, vector<1x8x128xbf16>, vector<1x8x128xf32> -> vector<1x8x128xf32>
    "tpu.trace_stop"() : () -> ()
    %c0_9 = arith.constant 0 : index
    %c0_10 = arith.constant 0 : index
    %c0_11 = arith.constant 0 : index
    %28 = vector.load %arg3[%c0_9, %c0_10, %c0_11] : memref<1x8x128xf32, #tpu.memory_space<vmem>>, vector<1x8x128xf32>
    tpu.vector_store %arg3[%c0_9, %c0_10, %c0_11], %27 {strides = array<i32>} : memref<1x8x128xf32, #tpu.memory_space<vmem>>, vector<1x8x128xf32>,
    return
  }
  func.func @transform_0(%arg0: i32) -> (i32, i32, i32) {
    %c0_i32 = arith.constant 0 : i32
    %c0_i32_0 = arith.constant 0 : i32
    %c0_i32_1 = arith.constant 0 : i32
    return %arg0, %c0_i32, %c0_i32_0 : i32, i32, i32
  }
  func.func @transform_1(%arg0: i32) -> (i32, i32) {
    %c0_i32 = arith.constant 0 : i32
    %c0_i32_0 = arith.constant 0 : i32
    %c0_i32_1 = arith.constant 0 : i32
    return %c0_i32, %c0_i32_0 : i32, i32
  }
  func.func @transform_2(%arg0: i32) -> (i32, i32, i32) {
    %c0_i32 = arith.constant 0 : i32
    %c0_i32_0 = arith.constant 0 : i32
    %c0_i32_1 = arith.constant 0 : i32
    return %arg0, %c0_i32, %c0_i32_0 : i32, i32, i32
  }
}

</mosaic_0001>

<llo_original>
// kernel: tpu_custom_call.1
$region0: #{tpu_custom_call.1}
  #allocation0 [shape = 'u32[]', space=smem, size = 0x4, offset = 0x4, fixed_abs, tag = 'smem constant byte address 0x4 - core index']
  #allocation1 [shape = 'u32[72,128]{1,0:T(1,128)}', space=vmem, size = 0x9000, scoped, tag = 'internal scratch']
  %s0 = inlined_call_operand.hbm [shape: bf16[2,8,512], index: 0, kind: input, shape index: {}]
  %s1 = inlined_call_operand.hbm [shape: bf16[512,384], index: 1, kind: input, shape index: {}]
  %s2 = inlined_call_operand.hbm [shape: f32[2,8,128], index: 2, kind: output, shape index: {}]
  %s3 = sld [smem:[#allocation0]]
  $region49: #{tpu_custom_call.1} parent=0
    _
  %s5 = ssub.s32 1, %s3
  %s6 = scalar_select 0, %s5, %s3
  $region1: #{tpu_custom_call.1} parent=0
    #allocation2 [shape = 'u8[16384]{0}', space=vmem, size = 0x4000, scoped, tag = 'input window, operand 0']
    #allocation3 [shape = 's32[2]{0}', space=sflag, size = 0x8, scoped, tag = 'scoped memory for tpu_custom_call.1']
    #allocation4 [shape = 's32[2]{0}', space=sflag, size = 0x8, scoped, tag = 'scoped memory for tpu_custom_call.1']
    #allocation5 [shape = 'u8[393216]{0}', space=vmem, size = 0x60000, scoped, tag = 'input window, operand 1, single buffered']
    #allocation6 [shape = 's32[1]{0}', space=sflag, size = 0x4, scoped, tag = 'scoped memory for tpu_custom_call.1']
    #allocation7 [shape = 'u8[8192]{0}', space=vmem, size = 0x2000, scoped, tag = 'output window, operand 0']
    %7 = vsyncpa [#allocation3], 0
    %s8 = scalar_lea.sflag [#allocation3], 1
    %9 = vsyncpa %s8, 0
    %10 = vsyncpa [#allocation6], 0
    %11 = vsyncpa [#allocation4], 0
    %s12 = scalar_lea.sflag [#allocation4], 1
    %13 = vsyncpa %s12, 0
    loop: start=0, step=1, limit=4
    $region2: #{tpu_custom_call.1} parent=1 // loop_pre_header
      _
    $region3: #{tpu_custom_call.1} parent=1 // loop_header
      %s15 = sphi 0, %s19
      %p16 = scmp.ge.s32.totalorder %s15, 4
      %s25 = sphi 0, %s27
      %s28 = sphi 0, %s25
      %s29 = sphi 0, %s28
      %s45 = sphi 0, %s29
      %s49 = sphi 0, %s49
      %s51 = sphi 0, %s49
      %s52 = sphi 0, %s51
      %s66 = sphi 0, %s52
      %s72 = sphi 0, %s74
      %s75 = sphi 0, %s72
      %s76 = sphi 0, %s75
      %s92 = sphi 0, %s76
    $region4: #{tpu_custom_call.1} parent=1 // loop_header_branch
      %18 = sbr.rel (%p16) target = $region8
    $region5: #{tpu_custom_call.1} parent=1 // loop_body
      %s20 = ssub.s32 %s15, 1
      %s21 = ssub.s32 %s15, 2
      %s22 = sadd.s32 %s15, 1
      %s23 = ssub.s32 %s15, %s22
      %p24 = scmp.eq.s32.totalorder %s23, 0
      %s26 = sadd.s32 %s25, 1
      %s27 = scalar_select %p24, %s25, %s26
      %p30 = pneg %p24
      %p31 = scmp.eq.s32.totalorder %s15, 1
      %p32 = por %p30, %p31
      %p33 = scmp.ne.s32.totalorder %s25, %s28
      %p34 = scmp.eq.s32.totalorder %s15, 0
      %p35 = por %p33, %p34
      %p36 = scmp.ne.s32.totalorder %s25, %s28
      %p37 = scmp.eq.s32.totalorder %s20, 1
      %p38 = por %p36, %p37
      %p39 = scmp.ne.s32.totalorder %s28, %s29
      %p40 = scmp.eq.s32.totalorder %s20, 0
      %p41 = por %p39, %p40
      %p42 = scmp.ne.s32.totalorder %s28, %s29
      %p43 = scmp.eq.s32.totalorder %s21, 1
      %p44 = por %p42, %p43
      %p46 = scmp.ne.s32.totalorder %s29, %s45
      %p47 = scmp.eq.s32.totalorder %s21, 0
      %p48 = por %p46, %p47
      %s50 = sadd.s32 %s49, 1
      %p53 = scmp.eq.s32.totalorder %s15, 1
      %p54 = scmp.ne.s32.totalorder %s49, %s51
      %p55 = scmp.eq.s32.totalorder %s15, 0
      %p56 = por %p54, %p55
      %p57 = scmp.ne.s32.totalorder %s49, %s51
      %p58 = scmp.eq.s32.totalorder %s20, 1
      %p59 = por %p57, %p58
      %p60 = scmp.ne.s32.totalorder %s51, %s52
      %p61 = scmp.eq.s32.totalorder %s20, 0
      %p62 = por %p60, %p61
      %p63 = scmp.ne.s32.totalorder %s51, %s52
      %p64 = scmp.eq.s32.totalorder %s21, 1
      %p65 = por %p63, %p64
      %p67 = scmp.ne.s32.totalorder %s52, %s66
      %p68 = scmp.eq.s32.totalorder %s21, 0
      %p69 = por %p67, %p68
      %s70 = ssub.s32 %s15, %s22
      %p71 = scmp.eq.s32.totalorder %s70, 0
      %s73 = sadd.s32 %s72, 1
      %s74 = scalar_select %p71, %s72, %s73
      %p77 = pneg %p71
      %p78 = scmp.eq.s32.totalorder %s15, 1
      %p79 = por %p77, %p78
      %p80 = scmp.ne.s32.totalorder %s72, %s75
      %p81 = scmp.eq.s32.totalorder %s15, 0
      %p82 = por %p80, %p81
      %p83 = scmp.ne.s32.totalorder %s72, %s75
      %p84 = scmp.eq.s32.totalorder %s20, 1
      %p85 = por %p83, %p84
      %p86 = scmp.ne.s32.totalorder %s75, %s76
      %p87 = scmp.eq.s32.totalorder %s20, 0
      %p88 = por %p86, %p87
      %p89 = scmp.ne.s32.totalorder %s75, %s76
      %p90 = scmp.eq.s32.totalorder %s21, 1
      %p91 = por %p89, %p90
      %p93 = scmp.ne.s32.totalorder %s76, %s92
      %p94 = scmp.eq.s32.totalorder %s21, 0
      %p95 = por %p93, %p94
      %p96 = scmp.le.s32.totalorder 1, %s15
      %p97 = scmp.lt.s32.totalorder %s15, 3
      %p98 = pnand %p96, %p97
      %p99 = pneg %p98
      // Predicated region
      $region9: #{tpu_custom_call.1} parent=5 // pred_check
        _
      $region10: #{tpu_custom_call.1} parent=5 // pred_check_branch
        %101 = sbr.rel (%p98) target = $region12
      $region11: #{tpu_custom_call.1} parent=5 // pred_region
        %s102 = ssub.s32 %s15, 1
        // Predicated region
        $region13: #{tpu_custom_call.1} parent=11 // pred_check
          %p103 = pneg %p62
        $region14: #{tpu_custom_call.1} parent=11 // pred_check_branch
          %105 = sbr.rel (%p103) target = $region16
        $region15: #{tpu_custom_call.1} parent=11 // pred_region
          %107 = vsyncadd [#allocation6], 0
          %s108 = sshll.u32 %s1, 4
          %s109 = int_to_ptr.hbm [resolvable:$true] %s108
          %s110 = sshll.u32 [#allocation5], 4
          %s111 = int_to_ptr.vmem [resolvable:$true] %s110
          %116 = dma.hbm_to_vmem [thread:$0]  %s109, 12288, %s111, [#allocation6], 192, 192, 12
        $region16: #{tpu_custom_call.1} parent=11 // pred_fallthru
          _
      $region12: #{tpu_custom_call.1} parent=5 // pred_fallthru
        _
      %p117 = scmp.lt.s32.totalorder %s15, 2
      // Predicated region
      $region17: #{tpu_custom_call.1} parent=5 // pred_check
        %p118 = pneg %p117
      $region18: #{tpu_custom_call.1} parent=5 // pred_check_branch
        %120 = sbr.rel (%p118) target = $region20
      $region19: #{tpu_custom_call.1} parent=5 // pred_region
        // Predicated region
        $region21: #{tpu_custom_call.1} parent=19 // pred_check
          %p121 = pneg %p35
        $region22: #{tpu_custom_call.1} parent=19 // pred_check_branch
          %123 = sbr.rel (%p121) target = $region24
        $region23: #{tpu_custom_call.1} parent=19 // pred_region
          %s124 = sand.u32 %s25, 1
          %s125 = scalar_lea.sflag [#allocation3], %s124
          %s126 = sand.u32 %s25, 1
          %s127 = smul.addr %s126, 16
          %s128 = scalar_lea.vmem [#allocation2], %s127
          %130 = vsyncadd %s125, 0
          %s131 = smul.addr %s15, 4
          %s132 = smul.addr %s131, 4
          %s133 = scalar_lea.hbm %s0, %s132
          %s135 = sshll.u32 %s133, 4
          %s136 = int_to_ptr.hbm [resolvable:$true] %s135
          %s137 = sshll.u32 %s128, 4
          %s138 = int_to_ptr.vmem [resolvable:$true] %s137
          %140 = dma.hbm_to_vmem [thread:$0]  %s136, 256, %s138, %s125
        $region24: #{tpu_custom_call.1} parent=19 // pred_fallthru
          _
      $region20: #{tpu_custom_call.1} parent=5 // pred_fallthru
        _
      %p141 = scmp.le.s32.totalorder 1, %s15
      %p142 = scmp.lt.s32.totalorder %s15, 3
      %p143 = pnand %p141, %p142
      %p144 = pneg %p143
      // Predicated region
      $region25: #{tpu_custom_call.1} parent=5 // pred_check
        _
      $region26: #{tpu_custom_call.1} parent=5 // pred_check_branch
        %146 = sbr.rel (%p143) target = $region28
      $region27: #{tpu_custom_call.1} parent=5 // pred_region
        %s147 = ssub.s32 %s15, 1
        %s148 = sand.u32 %s28, 1
        %s149 = scalar_lea.sflag [#allocation3], %s148
        %s150 = sand.u32 %s28, 1
        %s151 = smul.addr %s150, 16
        %s152 = scalar_lea.vmem [#allocation2], %s151
        // Predicated region
        $region29: #{tpu_custom_call.1} parent=27 // pred_check
          %p153 = pneg %p41
        $region30: #{tpu_custom_call.1} parent=27 // pred_check_branch
          %155 = sbr.rel (%p153) target = $region32
        $region31: #{tpu_custom_call.1} parent=27 // pred_region
          %157 = dma.done %s149, 256
        $region32: #{tpu_custom_call.1} parent=27 // pred_fallthru
          _
        // Predicated region
        $region33: #{tpu_custom_call.1} parent=27 // pred_check
          %p158 = pneg %p62
        $region34: #{tpu_custom_call.1} parent=27 // pred_check_branch
          %160 = sbr.rel (%p158) target = $region36
        $region35: #{tpu_custom_call.1} parent=27 // pred_region
          %162 = dma.done [#allocation6], 12288
        $region36: #{tpu_custom_call.1} parent=27 // pred_fallthru
          _
        %s163 = sand.u32 %s28, 1
        %s164 = scalar_lea.sflag [#allocation3], %s163
        %s165 = sand.u32 %s28, 1
        %s166 = smul.addr %s165, 16
        %s167 = scalar_lea.vmem [#allocation2], %s166
        %p168 = pneg %p41
        %p169 = pneg %p38
        %p170 = pneg %p62
        %p171 = pneg %p59
        %p172 = pneg %p88
        %p173 = pneg %p85
        %s174 = sand.u32 %s75, 1
        %s175 = scalar_lea.sflag [#allocation4], %s174
        %s176 = sand.u32 %s75, 1
        %s177 = smul.addr %s176, 8
        %s178 = scalar_lea.vmem [#allocation7], %s177
        %v180 = vld [vmem:[%s152] sm:$0xff]
        %v181 = vld [vmem:[%s152 + $0x8] sm:$0xff]
        %v182 = vld [vmem:[#allocation5] sm:$0xff]
        %v183 = vld [vmem:[#allocation5 + $0x8] sm:$0xf]
        %v184 = vld [vmem:[#allocation5 + $0xc] sm:$0xff]
        %v185 = vld [vmem:[#allocation5 + $0x14] sm:$0xf]
        %v186 = vld [vmem:[#allocation5 + $0x18] sm:$0xff]
        %v187 = vld [vmem:[#allocation5 + $0x20] sm:$0xf]
        %v188 = vld [vmem:[#allocation5 + $0x24] sm:$0xff]
        %v189 = vld [vmem:[#allocation5 + $0x2c] sm:$0xf]
        %v190 = vld [vmem:[#allocation5 + $0x30] sm:$0xff]
        %v191 = vld [vmem:[#allocation5 + $0x38] sm:$0xf]
        %v192 = vld [vmem:[#allocation5 + $0x3c] sm:$0xff]
        %v193 = vld [vmem:[#allocation5 + $0x44] sm:$0xf]
        %v194 = vld [vmem:[#allocation5 + $0x48] sm:$0xff]
        %v195 = vld [vmem:[#allocation5 + $0x50] sm:$0xf]
        %v196 = vld [vmem:[#allocation5 + $0x54] sm:$0xff]
        %v197 = vld [vmem:[#allocation5 + $0x5c] sm:$0xf]
        %v198 = vld [vmem:[#allocation5 + $0x60] sm:$0xff]
        %v199 = vld [vmem:[#allocation5 + $0x68] sm:$0xf]
        %v200 = vld [vmem:[#allocation5 + $0x6c] sm:$0xff]
        %v201 = vld [vmem:[#allocation5 + $0x74] sm:$0xf]
        %v202 = vld [vmem:[#allocation5 + $0x78] sm:$0xff]
        %v203 = vld [vmem:[#allocation5 + $0x80] sm:$0xf]
        %v204 = vld [vmem:[#allocation5 + $0x84] sm:$0xff]
        %v205 = vld [vmem:[#allocation5 + $0x8c] sm:$0xf]
        %v206 = vld [vmem:[#allocation5 + $0x90] sm:$0xff]
        %v207 = vld [vmem:[#allocation5 + $0x98] sm:$0xf]
        %v208 = vld [vmem:[#allocation5 + $0x9c] sm:$0xff]
        %v209 = vld [vmem:[#allocation5 + $0xa4] sm:$0xf]
        %v210 = vld [vmem:[#allocation5 + $0xa8] sm:$0xff]
        %v211 = vld [vmem:[#allocation5 + $0xb0] sm:$0xf]
        %v212 = vld [vmem:[#allocation5 + $0xb4] sm:$0xff]
        %v213 = vld [vmem:[#allocation5 + $0xbc] sm:$0xf]
        %v214 = vld [vmem:[#allocation5 + $0xc0] sm:$0xff]
        %v215 = vld [vmem:[#allocation5 + $0xc8] sm:$0xf]
        %v216 = vld [vmem:[#allocation5 + $0xcc] sm:$0xff]
        %v217 = vld [vmem:[#allocation5 + $0xd4] sm:$0xf]
        %v218 = vld [vmem:[#allocation5 + $0xd8] sm:$0xff]
        %v219 = vld [vmem:[#allocation5 + $0xe0] sm:$0xf]
        %v220 = vld [vmem:[#allocation5 + $0xe4] sm:$0xff]
        %v221 = vld [vmem:[#allocation5 + $0xec] sm:$0xf]
        %v222 = vld [vmem:[#allocation5 + $0xf0] sm:$0xff]
        %v223 = vld [vmem:[#allocation5 + $0xf8] sm:$0xf]
        %v224 = vld [vmem:[#allocation5 + $0xfc] sm:$0xff]
        %v225 = vld [vmem:[#allocation5 + $0x104] sm:$0xf]
        %v226 = vld [vmem:[#allocation5 + $0x108] sm:$0xff]
        %v227 = vld [vmem:[#allocation5 + $0x110] sm:$0xf]
        %v228 = vld [vmem:[#allocation5 + $0x114] sm:$0xff]
        %v229 = vld [vmem:[#allocation5 + $0x11c] sm:$0xf]
        %v230 = vld [vmem:[#allocation5 + $0x120] sm:$0xff]
        %v231 = vld [vmem:[#allocation5 + $0x128] sm:$0xf]
        %v232 = vld [vmem:[#allocation5 + $0x12c] sm:$0xff]
        %v233 = vld [vmem:[#allocation5 + $0x134] sm:$0xf]
        %v234 = vld [vmem:[#allocation5 + $0x138] sm:$0xff]
        %v235 = vld [vmem:[#allocation5 + $0x140] sm:$0xf]
        %v236 = vld [vmem:[#allocation5 + $0x144] sm:$0xff]
        %v237 = vld [vmem:[#allocation5 + $0x14c] sm:$0xf]
        %v238 = vld [vmem:[#allocation5 + $0x150] sm:$0xff]
        %v239 = vld [vmem:[#allocation5 + $0x158] sm:$0xf]
        %v240 = vld [vmem:[#allocation5 + $0x15c] sm:$0xff]
        %v241 = vld [vmem:[#allocation5 + $0x164] sm:$0xf]
        %v242 = vld [vmem:[#allocation5 + $0x168] sm:$0xff]
        %v243 = vld [vmem:[#allocation5 + $0x170] sm:$0xf]
        %v244 = vld [vmem:[#allocation5 + $0x174] sm:$0xff]
        %v245 = vld [vmem:[#allocation5 + $0x17c] sm:$0xf]
        %v246 = vld [vmem:[#allocation5 + $0x180] sm:$0xff]
        %v247 = vld [vmem:[#allocation5 + $0x188] sm:$0xf]
        %v248 = vld [vmem:[#allocation5 + $0x18c] sm:$0xff]
        %v249 = vld [vmem:[#allocation5 + $0x194] sm:$0xf]
        %v250 = vld [vmem:[#allocation5 + $0x198] sm:$0xff]
        %v251 = vld [vmem:[#allocation5 + $0x1a0] sm:$0xf]
        %v252 = vld [vmem:[#allocation5 + $0x1a4] sm:$0xff]
        %v253 = vld [vmem:[#allocation5 + $0x1ac] sm:$0xf]
        %v254 = vld [vmem:[#allocation5 + $0x1b0] sm:$0xff]
        %v255 = vld [vmem:[#allocation5 + $0x1b8] sm:$0xf]
        %v256 = vld [vmem:[#allocation5 + $0x1bc] sm:$0xff]
        %v257 = vld [vmem:[#allocation5 + $0x1c4] sm:$0xf]
        %v258 = vld [vmem:[#allocation5 + $0x1c8] sm:$0xff]
        %v259 = vld [vmem:[#allocation5 + $0x1d0] sm:$0xf]
        %v260 = vld [vmem:[#allocation5 + $0x1d4] sm:$0xff]
        %v261 = vld [vmem:[#allocation5 + $0x1dc] sm:$0xf]
        %v262 = vld [vmem:[#allocation5 + $0x1e0] sm:$0xff]
        %v263 = vld [vmem:[#allocation5 + $0x1e8] sm:$0xf]
        %v264 = vld [vmem:[#allocation5 + $0x1ec] sm:$0xff]
        %v265 = vld [vmem:[#allocation5 + $0x1f4] sm:$0xf]
        %v266 = vld [vmem:[#allocation5 + $0x1f8] sm:$0xff]
        %v267 = vld [vmem:[#allocation5 + $0x200] sm:$0xf]
        %v268 = vld [vmem:[#allocation5 + $0x204] sm:$0xff]
        %v269 = vld [vmem:[#allocation5 + $0x20c] sm:$0xf]
        %v270 = vld [vmem:[#allocation5 + $0x210] sm:$0xff]
        %v271 = vld [vmem:[#allocation5 + $0x218] sm:$0xf]
        %v272 = vld [vmem:[#allocation5 + $0x21c] sm:$0xff]
        %v273 = vld [vmem:[#allocation5 + $0x224] sm:$0xf]
        %v274 = vld [vmem:[#allocation5 + $0x228] sm:$0xff]
        %v275 = vld [vmem:[#allocation5 + $0x230] sm:$0xf]
        %v276 = vld [vmem:[#allocation5 + $0x234] sm:$0xff]
        %v277 = vld [vmem:[#allocation5 + $0x23c] sm:$0xf]
        %v278 = vld [vmem:[#allocation5 + $0x240] sm:$0xff]
        %v279 = vld [vmem:[#allocation5 + $0x248] sm:$0xf]
        %v280 = vld [vmem:[#allocation5 + $0x24c] sm:$0xff]
        %v281 = vld [vmem:[#allocation5 + $0x254] sm:$0xf]
        %v282 = vld [vmem:[#allocation5 + $0x258] sm:$0xff]
        %v283 = vld [vmem:[#allocation5 + $0x260] sm:$0xf]
        %v284 = vld [vmem:[#allocation5 + $0x264] sm:$0xff]
        %v285 = vld [vmem:[#allocation5 + $0x26c] sm:$0xf]
        %v286 = vld [vmem:[#allocation5 + $0x270] sm:$0xff]
        %v287 = vld [vmem:[#allocation5 + $0x278] sm:$0xf]
        %v288 = vld [vmem:[#allocation5 + $0x27c] sm:$0xff]
        %v289 = vld [vmem:[#allocation5 + $0x284] sm:$0xf]
        %v290 = vld [vmem:[#allocation5 + $0x288] sm:$0xff]
        %v291 = vld [vmem:[#allocation5 + $0x290] sm:$0xf]
        %v292 = vld [vmem:[#allocation5 + $0x294] sm:$0xff]
        %v293 = vld [vmem:[#allocation5 + $0x29c] sm:$0xf]
        %v294 = vld [vmem:[#allocation5 + $0x2a0] sm:$0xff]
        %v295 = vld [vmem:[#allocation5 + $0x2a8] sm:$0xf]
        %v296 = vld [vmem:[#allocation5 + $0x2ac] sm:$0xff]
        %v297 = vld [vmem:[#allocation5 + $0x2b4] sm:$0xf]
        %v298 = vld [vmem:[#allocation5 + $0x2b8] sm:$0xff]
        %v299 = vld [vmem:[#allocation5 + $0x2c0] sm:$0xf]
        %v300 = vld [vmem:[#allocation5 + $0x2c4] sm:$0xff]
        %v301 = vld [vmem:[#allocation5 + $0x2cc] sm:$0xf]
        %v302 = vld [vmem:[#allocation5 + $0x2d0] sm:$0xff]
        %v303 = vld [vmem:[#allocation5 + $0x2d8] sm:$0xf]
        %v304 = vld [vmem:[#allocation5 + $0x2dc] sm:$0xff]
        %v305 = vld [vmem:[#allocation5 + $0x2e4] sm:$0xf]
        %v306 = vld [vmem:[#allocation5 + $0x2e8] sm:$0xff]
        %v307 = vld [vmem:[#allocation5 + $0x2f0] sm:$0xf]
        %v308 = vld [vmem:[#allocation5 + $0x2f4] sm:$0xff]
        %v309 = vld [vmem:[#allocation5 + $0x2fc] sm:$0xf]
        %v312 = vunpack.c.l.b16 %v180
        %v313 = vunpack.c.h.b16 %v180
        %v314 = vunpack.c.l.b16 %v181
        %v315 = vunpack.c.h.b16 %v181
        %v316 = vpack.c.b16 %v312, %v312
        %v317 = vpack.c.b16 %v313, %v313
        %v318 = vpack.c.b16 %v314, %v314
        %v319 = vpack.c.b16 %v315, %v315
        %v452 = vunpack.c.l.b16 %v182
        %v453 = vunpack.c.h.b16 %v182
        %v454 = vunpack.c.l.b16 %v183
        %v455 = vunpack.c.l.b16 %v184
        %v456 = vunpack.c.h.b16 %v184
        %v457 = vunpack.c.l.b16 %v185
        %v458 = vunpack.c.l.b16 %v186
        %v459 = vunpack.c.h.b16 %v186
        %v460 = vunpack.c.l.b16 %v187
        %v461 = vunpack.c.l.b16 %v188
        %v462 = vunpack.c.h.b16 %v188
        %v463 = vunpack.c.l.b16 %v189
        %v464 = vunpack.c.l.b16 %v190
        %v465 = vunpack.c.h.b16 %v190
        %v466 = vunpack.c.l.b16 %v191
        %v467 = vunpack.c.l.b16 %v192
        %v468 = vunpack.c.h.b16 %v192
        %v469 = vunpack.c.l.b16 %v193
        %v470 = vunpack.c.l.b16 %v194
        %v471 = vunpack.c.h.b16 %v194
        %v472 = vunpack.c.l.b16 %v195
        %v473 = vunpack.c.l.b16 %v196
        %v474 = vunpack.c.h.b16 %v196
        %v475 = vunpack.c.l.b16 %v197
        %v476 = vunpack.c.l.b16 %v198
        %v477 = vunpack.c.h.b16 %v198
        %v478 = vunpack.c.l.b16 %v199
        %v479 = vunpack.c.l.b16 %v200
        %v480 = vunpack.c.h.b16 %v200
        %v481 = vunpack.c.l.b16 %v201
        %v482 = vunpack.c.l.b16 %v202
        %v483 = vunpack.c.h.b16 %v202
        %v484 = vunpack.c.l.b16 %v203
        %v485 = vunpack.c.l.b16 %v204
        %v486 = vunpack.c.h.b16 %v204
        %v487 = vunpack.c.l.b16 %v205
        %v488 = vunpack.c.l.b16 %v206
        %v489 = vunpack.c.h.b16 %v206
        %v490 = vunpack.c.l.b16 %v207
        %v491 = vunpack.c.l.b16 %v208
        %v492 = vunpack.c.h.b16 %v208
        %v493 = vunpack.c.l.b16 %v209
        %v494 = vunpack.c.l.b16 %v210
        %v495 = vunpack.c.h.b16 %v210
        %v496 = vunpack.c.l.b16 %v211
        %v497 = vunpack.c.l.b16 %v212
        %v498 = vunpack.c.h.b16 %v212
        %v499 = vunpack.c.l.b16 %v213
        %v500 = vunpack.c.l.b16 %v214
        %v501 = vunpack.c.h.b16 %v214
        %v502 = vunpack.c.l.b16 %v215
        %v503 = vunpack.c.l.b16 %v216
        %v504 = vunpack.c.h.b16 %v216
        %v505 = vunpack.c.l.b16 %v217
        %v506 = vunpack.c.l.b16 %v218
        %v507 = vunpack.c.h.b16 %v218
        %v508 = vunpack.c.l.b16 %v219
        %v509 = vunpack.c.l.b16 %v220
        %v510 = vunpack.c.h.b16 %v220
        %v511 = vunpack.c.l.b16 %v221
        %v512 = vunpack.c.l.b16 %v222
        %v513 = vunpack.c.h.b16 %v222
        %v514 = vunpack.c.l.b16 %v223
        %v515 = vunpack.c.l.b16 %v224
        %v516 = vunpack.c.h.b16 %v224
        %v517 = vunpack.c.l.b16 %v225
        %v518 = vunpack.c.l.b16 %v226
        %v519 = vunpack.c.h.b16 %v226
        %v520 = vunpack.c.l.b16 %v227
        %v521 = vunpack.c.l.b16 %v228
        %v522 = vunpack.c.h.b16 %v228
        %v523 = vunpack.c.l.b16 %v229
        %v524 = vunpack.c.l.b16 %v230
        %v525 = vunpack.c.h.b16 %v230
        %v526 = vunpack.c.l.b16 %v231
        %v527 = vunpack.c.l.b16 %v232
        %v528 = vunpack.c.h.b16 %v232
        %v529 = vunpack.c.l.b16 %v233
        %v530 = vunpack.c.l.b16 %v234
        %v531 = vunpack.c.h.b16 %v234
        %v532 = vunpack.c.l.b16 %v235
        %v533 = vunpack.c.l.b16 %v236
        %v534 = vunpack.c.h.b16 %v236
        %v535 = vunpack.c.l.b16 %v237
        %v536 = vunpack.c.l.b16 %v238
        %v537 = vunpack.c.h.b16 %v238
        %v538 = vunpack.c.l.b16 %v239
        %v539 = vunpack.c.l.b16 %v240
        %v540 = vunpack.c.h.b16 %v240
        %v541 = vunpack.c.l.b16 %v241
        %v542 = vunpack.c.l.b16 %v242
        %v543 = vunpack.c.h.b16 %v242
        %v544 = vunpack.c.l.b16 %v243
        %v545 = vunpack.c.l.b16 %v244
        %v546 = vunpack.c.h.b16 %v244
        %v547 = vunpack.c.l.b16 %v245
        %v548 = vunpack.c.l.b16 %v246
        %v549 = vunpack.c.h.b16 %v246
        %v550 = vunpack.c.l.b16 %v247
        %v551 = vunpack.c.l.b16 %v248
        %v552 = vunpack.c.h.b16 %v248
        %v553 = vunpack.c.l.b16 %v249
        %v554 = vunpack.c.l.b16 %v250
        %v555 = vunpack.c.h.b16 %v250
        %v556 = vunpack.c.l.b16 %v251
        %v557 = vunpack.c.l.b16 %v252
        %v558 = vunpack.c.h.b16 %v252
        %v559 = vunpack.c.l.b16 %v253
        %v560 = vunpack.c.l.b16 %v254
        %v561 = vunpack.c.h.b16 %v254
        %v562 = vunpack.c.l.b16 %v255
        %v563 = vunpack.c.l.b16 %v256
        %v564 = vunpack.c.h.b16 %v256
        %v565 = vunpack.c.l.b16 %v257
        %v566 = vunpack.c.l.b16 %v258
        %v567 = vunpack.c.h.b16 %v258
        %v568 = vunpack.c.l.b16 %v259
        %v569 = vunpack.c.l.b16 %v260
        %v570 = vunpack.c.h.b16 %v260
        %v571 = vunpack.c.l.b16 %v261
        %v572 = vunpack.c.l.b16 %v262
        %v573 = vunpack.c.h.b16 %v262
        %v574 = vunpack.c.l.b16 %v263
        %v575 = vunpack.c.l.b16 %v264
        %v576 = vunpack.c.h.b16 %v264
        %v577 = vunpack.c.l.b16 %v265
        %v578 = vunpack.c.l.b16 %v266
        %v579 = vunpack.c.h.b16 %v266
        %v580 = vunpack.c.l.b16 %v267
        %v581 = vunpack.c.l.b16 %v268
        %v582 = vunpack.c.h.b16 %v268
        %v583 = vunpack.c.l.b16 %v269
        %v584 = vunpack.c.l.b16 %v270
        %v585 = vunpack.c.h.b16 %v270
        %v586 = vunpack.c.l.b16 %v271
        %v587 = vunpack.c.l.b16 %v272
        %v588 = vunpack.c.h.b16 %v272
        %v589 = vunpack.c.l.b16 %v273
        %v590 = vunpack.c.l.b16 %v274
        %v591 = vunpack.c.h.b16 %v274
        %v592 = vunpack.c.l.b16 %v275
        %v593 = vunpack.c.l.b16 %v276
        %v594 = vunpack.c.h.b16 %v276
        %v595 = vunpack.c.l.b16 %v277
        %v596 = vunpack.c.l.b16 %v278
        %v597 = vunpack.c.h.b16 %v278
        %v598 = vunpack.c.l.b16 %v279
        %v599 = vunpack.c.l.b16 %v280
        %v600 = vunpack.c.h.b16 %v280
        %v601 = vunpack.c.l.b16 %v281
        %v602 = vunpack.c.l.b16 %v282
        %v603 = vunpack.c.h.b16 %v282
        %v604 = vunpack.c.l.b16 %v283
        %v605 = vunpack.c.l.b16 %v284
        %v606 = vunpack.c.h.b16 %v284
        %v607 = vunpack.c.l.b16 %v285
        %v608 = vunpack.c.l.b16 %v286
        %v609 = vunpack.c.h.b16 %v286
        %v610 = vunpack.c.l.b16 %v287
        %v611 = vunpack.c.l.b16 %v288
        %v612 = vunpack.c.h.b16 %v288
        %v613 = vunpack.c.l.b16 %v289
        %v614 = vunpack.c.l.b16 %v290
        %v615 = vunpack.c.h.b16 %v290
        %v616 = vunpack.c.l.b16 %v291
        %v617 = vunpack.c.l.b16 %v292
        %v618 = vunpack.c.h.b16 %v292
        %v619 = vunpack.c.l.b16 %v293
        %v620 = vunpack.c.l.b16 %v294
        %v621 = vunpack.c.h.b16 %v294
        %v622 = vunpack.c.l.b16 %v295
        %v623 = vunpack.c.l.b16 %v296
        %v624 = vunpack.c.h.b16 %v296
        %v625 = vunpack.c.l.b16 %v297
        %v626 = vunpack.c.l.b16 %v298
        %v627 = vunpack.c.h.b16 %v298
        %v628 = vunpack.c.l.b16 %v299
        %v629 = vunpack.c.l.b16 %v300
        %v630 = vunpack.c.h.b16 %v300
        %v631 = vunpack.c.l.b16 %v301
        %v632 = vunpack.c.l.b16 %v302
        %v633 = vunpack.c.h.b16 %v302
        %v634 = vunpack.c.l.b16 %v303
        %v635 = vunpack.c.l.b16 %v304
        %v636 = vunpack.c.h.b16 %v304
        %v637 = vunpack.c.l.b16 %v305
        %v638 = vunpack.c.l.b16 %v306
        %v639 = vunpack.c.h.b16 %v306
        %v640 = vunpack.c.l.b16 %v307
        %v641 = vunpack.c.l.b16 %v308
        %v642 = vunpack.c.h.b16 %v308
        %v643 = vunpack.c.l.b16 %v309
        %v644 = vpack.c.b16 %v455, %v452
        %v645 = vpack.c.b16 %v456, %v453
        %v646 = vpack.c.b16 %v457, %v454
        %v647 = vpack.c.b16 %v461, %v458
        %v648 = vpack.c.b16 %v462, %v459
        %v649 = vpack.c.b16 %v463, %v460
        %v650 = vpack.c.b16 %v467, %v464
        %v651 = vpack.c.b16 %v468, %v465
        %v652 = vpack.c.b16 %v469, %v466
        %v653 = vpack.c.b16 %v473, %v470
        %v654 = vpack.c.b16 %v474, %v471
        %v655 = vpack.c.b16 %v475, %v472
        %v656 = vpack.c.b16 %v479, %v476
        %v657 = vpack.c.b16 %v480, %v477
        %v658 = vpack.c.b16 %v481, %v478
        %v659 = vpack.c.b16 %v485, %v482
        %v660 = vpack.c.b16 %v486, %v483
        %v661 = vpack.c.b16 %v487, %v484
        %v662 = vpack.c.b16 %v491, %v488
        %v663 = vpack.c.b16 %v492, %v489
        %v664 = vpack.c.b16 %v493, %v490
        %v665 = vpack.c.b16 %v497, %v494
        %v666 = vpack.c.b16 %v498, %v495
        %v667 = vpack.c.b16 %v499, %v496
        %v668 = vpack.c.b16 %v503, %v500
        %v669 = vpack.c.b16 %v504, %v501
        %v670 = vpack.c.b16 %v505, %v502
        %v671 = vpack.c.b16 %v509, %v506
        %v672 = vpack.c.b16 %v510, %v507
        %v673 = vpack.c.b16 %v511, %v508
        %v674 = vpack.c.b16 %v515, %v512
        %v675 = vpack.c.b16 %v516, %v513
        %v676 = vpack.c.b16 %v517, %v514
        %v677 = vpack.c.b16 %v521, %v518
        %v678 = vpack.c.b16 %v522, %v519
        %v679 = vpack.c.b16 %v523, %v520
        %v680 = vpack.c.b16 %v527, %v524
        %v681 = vpack.c.b16 %v528, %v525
        %v682 = vpack.c.b16 %v529, %v526
        %v683 = vpack.c.b16 %v533, %v530
        %v684 = vpack.c.b16 %v534, %v531
        %v685 = vpack.c.b16 %v535, %v532
        %v686 = vpack.c.b16 %v539, %v536
        %v687 = vpack.c.b16 %v540, %v537
        %v688 = vpack.c.b16 %v541, %v538
        %v689 = vpack.c.b16 %v545, %v542
        %v690 = vpack.c.b16 %v546, %v543
        %v691 = vpack.c.b16 %v547, %v544
        %v692 = vpack.c.b16 %v551, %v548
        %v693 = vpack.c.b16 %v552, %v549
        %v694 = vpack.c.b16 %v553, %v550
        %v695 = vpack.c.b16 %v557, %v554
        %v696 = vpack.c.b16 %v558, %v555
        %v697 = vpack.c.b16 %v559, %v556
        %v698 = vpack.c.b16 %v563, %v560
        %v699 = vpack.c.b16 %v564, %v561
        %v700 = vpack.c.b16 %v565, %v562
        %v701 = vpack.c.b16 %v569, %v566
        %v702 = vpack.c.b16 %v570, %v567
        %v703 = vpack.c.b16 %v571, %v568
        %v704 = vpack.c.b16 %v575, %v572
        %v705 = vpack.c.b16 %v576, %v573
        %v706 = vpack.c.b16 %v577, %v574
        %v707 = vpack.c.b16 %v581, %v578
        %v708 = vpack.c.b16 %v582, %v579
        %v709 = vpack.c.b16 %v583, %v580
        %v710 = vpack.c.b16 %v587, %v584
        %v711 = vpack.c.b16 %v588, %v585
        %v712 = vpack.c.b16 %v589, %v586
        %v713 = vpack.c.b16 %v593, %v590
        %v714 = vpack.c.b16 %v594, %v591
        %v715 = vpack.c.b16 %v595, %v592
        %v716 = vpack.c.b16 %v599, %v596
        %v717 = vpack.c.b16 %v600, %v597
        %v718 = vpack.c.b16 %v601, %v598
        %v719 = vpack.c.b16 %v605, %v602
        %v720 = vpack.c.b16 %v606, %v603
        %v721 = vpack.c.b16 %v607, %v604
        %v722 = vpack.c.b16 %v611, %v608
        %v723 = vpack.c.b16 %v612, %v609
        %v724 = vpack.c.b16 %v613, %v610
        %v725 = vpack.c.b16 %v617, %v614
        %v726 = vpack.c.b16 %v618, %v615
        %v727 = vpack.c.b16 %v619, %v616
        %v728 = vpack.c.b16 %v623, %v620
        %v729 = vpack.c.b16 %v624, %v621
        %v730 = vpack.c.b16 %v625, %v622
        %v731 = vpack.c.b16 %v629, %v626
        %v732 = vpack.c.b16 %v630, %v627
        %v733 = vpack.c.b16 %v631, %v628
        %v734 = vpack.c.b16 %v635, %v632
        %v735 = vpack.c.b16 %v636, %v633
        %v736 = vpack.c.b16 %v637, %v634
        %v737 = vpack.c.b16 %v641, %v638
        %v738 = vpack.c.b16 %v642, %v639
        %v739 = vpack.c.b16 %v643, %v640
        %836 = vmatpush.bf16.msra.mxu0 %v665
        %837 = vmatpush.bf16.msra.mxu0 %v662
        %838 = vmatpush.bf16.msra.mxu0 %v659
        %839 = vmatpush.bf16.msra.mxu0 %v656
        %840 = vmatpush.bf16.msra.mxu0 %v653
        %841 = vmatpush.bf16.msra.mxu0 %v650
        %842 = vmatpush.bf16.msra.mxu0 %v647
        %843 = vmatpush.bf16.msra.mxu0 %v644
        %844 = vmatmul.bf16.gmra.mxu0 %v316
        %v845 = vpop.f32.mrf.mxu0
        %v846 = vadd.f32 0.0, %v845
        %v847 = vpop.f32.mrf.mxu0
        %848 = vdwg.mxu0
        %849 = vmatpush.bf16.msra.mxu0 %v689
        %850 = vmatpush.bf16.msra.mxu0 %v686
        %851 = vmatpush.bf16.msra.mxu0 %v683
        %852 = vmatpush.bf16.msra.mxu0 %v680
        %853 = vmatpush.bf16.msra.mxu0 %v677
        %854 = vmatpush.bf16.msra.mxu0 %v674
        %855 = vmatpush.bf16.msra.mxu0 %v671
        %856 = vmatpush.bf16.msra.mxu0 %v668
        %857 = vmatmul.bf16.gmra.mxu0 %v317
        %v858 = vpop.f32.mrf.mxu0
        %v859 = vadd.f32 %v846, %v858
        %v860 = vpop.f32.mrf.mxu0
        %861 = vdwg.mxu0
        %862 = vmatpush.bf16.msra.mxu0 %v713
        %863 = vmatpush.bf16.msra.mxu0 %v710
        %864 = vmatpush.bf16.msra.mxu0 %v707
        %865 = vmatpush.bf16.msra.mxu0 %v704
        %866 = vmatpush.bf16.msra.mxu0 %v701
        %867 = vmatpush.bf16.msra.mxu0 %v698
        %868 = vmatpush.bf16.msra.mxu0 %v695
        %869 = vmatpush.bf16.msra.mxu0 %v692
        %870 = vmatmul.bf16.gmra.mxu0 %v318
        %v871 = vpop.f32.mrf.mxu0
        %v872 = vadd.f32 %v859, %v871
        %v873 = vpop.f32.mrf.mxu0
        %874 = vdwg.mxu0
        %875 = vmatpush.bf16.msra.mxu0 %v737
        %876 = vmatpush.bf16.msra.mxu0 %v734
        %877 = vmatpush.bf16.msra.mxu0 %v731
        %878 = vmatpush.bf16.msra.mxu0 %v728
        %879 = vmatpush.bf16.msra.mxu0 %v725
        %880 = vmatpush.bf16.msra.mxu0 %v722
        %881 = vmatpush.bf16.msra.mxu0 %v719
        %882 = vmatpush.bf16.msra.mxu0 %v716
        %883 = vmatmul.bf16.gmra.mxu0 %v319
        %v884 = vpop.f32.mrf.mxu0
        %v885 = vadd.f32 %v872, %v884
        %v886 = vpop.f32.mrf.mxu0
        %887 = vdwg.mxu0
        %888 = vmatpush.bf16.msra.mxu0 %v666
        %889 = vmatpush.bf16.msra.mxu0 %v663
        %890 = vmatpush.bf16.msra.mxu0 %v660
        %891 = vmatpush.bf16.msra.mxu0 %v657
        %892 = vmatpush.bf16.msra.mxu0 %v654
        %893 = vmatpush.bf16.msra.mxu0 %v651
        %894 = vmatpush.bf16.msra.mxu0 %v648
        %895 = vmatpush.bf16.msra.mxu0 %v645
        %896 = vmatmul.bf16.gmra.mxu0 %v316
        %v897 = vpop.f32.mrf.mxu0
        %v898 = vadd.f32 0.0, %v897
        %v899 = vpop.f32.mrf.mxu0
        %900 = vdwg.mxu0
        %901 = vmatpush.bf16.msra.mxu0 %v690
        %902 = vmatpush.bf16.msra.mxu0 %v687
        %903 = vmatpush.bf16.msra.mxu0 %v684
        %904 = vmatpush.bf16.msra.mxu0 %v681
        %905 = vmatpush.bf16.msra.mxu0 %v678
        %906 = vmatpush.bf16.msra.mxu0 %v675
        %907 = vmatpush.bf16.msra.mxu0 %v672
        %908 = vmatpush.bf16.msra.mxu0 %v669
        %909 = vmatmul.bf16.gmra.mxu0 %v317
        %v910 = vpop.f32.mrf.mxu0
        %v911 = vadd.f32 %v898, %v910
        %v912 = vpop.f32.mrf.mxu0
        %913 = vdwg.mxu0
        %914 = vmatpush.bf16.msra.mxu0 %v714
        %915 = vmatpush.bf16.msra.mxu0 %v711
        %916 = vmatpush.bf16.msra.mxu0 %v708
        %917 = vmatpush.bf16.msra.mxu0 %v705
        %918 = vmatpush.bf16.msra.mxu0 %v702
        %919 = vmatpush.bf16.msra.mxu0 %v699
        %920 = vmatpush.bf16.msra.mxu0 %v696
        %921 = vmatpush.bf16.msra.mxu0 %v693
        %922 = vmatmul.bf16.gmra.mxu0 %v318
        %v923 = vpop.f32.mrf.mxu0
        %v924 = vadd.f32 %v911, %v923
        %v925 = vpop.f32.mrf.mxu0
        %926 = vdwg.mxu0
        %927 = vmatpush.bf16.msra.mxu0 %v738
        %928 = vmatpush.bf16.msra.mxu0 %v735
        %929 = vmatpush.bf16.msra.mxu0 %v732
        %930 = vmatpush.bf16.msra.mxu0 %v729
        %931 = vmatpush.bf16.msra.mxu0 %v726
        %932 = vmatpush.bf16.msra.mxu0 %v723
        %933 = vmatpush.bf16.msra.mxu0 %v720
        %934 = vmatpush.bf16.msra.mxu0 %v717
        %935 = vmatmul.bf16.gmra.mxu0 %v319
        %v936 = vpop.f32.mrf.mxu0
        %v937 = vadd.f32 %v924, %v936
        %v938 = vpop.f32.mrf.mxu0
        %939 = vdwg.mxu0
        %940 = vmatpush.bf16.msra.mxu0 %v667
        %941 = vmatpush.bf16.msra.mxu0 %v664
        %942 = vmatpush.bf16.msra.mxu0 %v661
        %943 = vmatpush.bf16.msra.mxu0 %v658
        %944 = vmatpush.bf16.msra.mxu0 %v655
        %945 = vmatpush.bf16.msra.mxu0 %v652
        %946 = vmatpush.bf16.msra.mxu0 %v649
        %947 = vmatpush.bf16.msra.mxu0 %v646
        %948 = vmatmul.bf16.gmra.mxu0 %v316
        %v949 = vpop.f32.mrf.mxu0
        %v950 = vadd.f32 0.0, %v949
        %v951 = vpop.f32.mrf.mxu0
        %952 = vdwg.mxu0
        %953 = vmatpush.bf16.msra.mxu0 %v691
        %954 = vmatpush.bf16.msra.mxu0 %v688
        %955 = vmatpush.bf16.msra.mxu0 %v685
        %956 = vmatpush.bf16.msra.mxu0 %v682
        %957 = vmatpush.bf16.msra.mxu0 %v679
        %958 = vmatpush.bf16.msra.mxu0 %v676
        %959 = vmatpush.bf16.msra.mxu0 %v673
        %960 = vmatpush.bf16.msra.mxu0 %v670
        %961 = vmatmul.bf16.gmra.mxu0 %v317
        %v962 = vpop.f32.mrf.mxu0
        %v963 = vadd.f32 %v950, %v962
        %v964 = vpop.f32.mrf.mxu0
        %965 = vdwg.mxu0
        %966 = vmatpush.bf16.msra.mxu0 %v715
        %967 = vmatpush.bf16.msra.mxu0 %v712
        %968 = vmatpush.bf16.msra.mxu0 %v709
        %969 = vmatpush.bf16.msra.mxu0 %v706
        %970 = vmatpush.bf16.msra.mxu0 %v703
        %971 = vmatpush.bf16.msra.mxu0 %v700
        %972 = vmatpush.bf16.msra.mxu0 %v697
        %973 = vmatpush.bf16.msra.mxu0 %v694
        %974 = vmatmul.bf16.gmra.mxu0 %v318
        %v975 = vpop.f32.mrf.mxu0
        %v976 = vadd.f32 %v963, %v975
        %v977 = vpop.f32.mrf.mxu0
        %978 = vdwg.mxu0
        %979 = vmatpush.bf16.msra.mxu0 %v739
        %980 = vmatpush.bf16.msra.mxu0 %v736
        %981 = vmatpush.bf16.msra.mxu0 %v733
        %982 = vmatpush.bf16.msra.mxu0 %v730
        %983 = vmatpush.bf16.msra.mxu0 %v727
        %984 = vmatpush.bf16.msra.mxu0 %v724
        %985 = vmatpush.bf16.msra.mxu0 %v721
        %986 = vmatpush.bf16.msra.mxu0 %v718
        %987 = vmatmul.bf16.gmra.mxu0 %v319
        %v988 = vpop.f32.mrf.mxu0
        %v989 = vadd.f32 %v976, %v988
        %v990 = vpop.f32.mrf.mxu0
        %991 = vdwg.mxu0
        %v992 = vpack.c.bf16 %v937, %v885
        %v993 = vpack.c.bf16 %v989, %v989
        %v995 = vrot.slane %v992, 4
        %997 = vmatpush.bf16.xpose.msra.mxu0 0
        %998 = vmatpush.bf16.xpose.msra.mxu0 0
        %999 = vmatpush.bf16.xpose.msra.mxu0 0
        %1000 = vmatpush.bf16.xpose.msra.mxu0 0
        %1001 = vmatpush.bf16.xpose.msra.mxu0 0
        %1002 = vmatpush.bf16.xpose.msra.mxu0 0
        %1003 = vmatpush.bf16.xpose.msra.mxu0 0
        %1004 = vmatpush.bf16.xpose.msra.mxu0 %v995
        %1005 = vmatmul.bf16.gmra.mxu0 %v992
        %v1006 = vpop.f32.mrf.mxu0
        %v1007 = vadd.f32 0.0, %v1006
        %v1008 = vpop.f32.mrf.mxu0
        %1009 = vdwg.mxu0
        %v1010 = vlaneseq
        %v1011 = vshrl.u32 %v1010, 7
        %v1012 = vlaneseq
        %v1013 = vand.u32 %v1012, 127
        %vm1014 = vcmp.le.s32.totalorder %v1013, %v1011
        %v1015 = vsel %vm1014, %v1007, -1e+30
        %vm1016 = vcmask 64512
        %v1017 = vsel %vm1016, %v1015, -inf
        %1018 = vmax.xlane.f32.xlu0 %v1017
        %v1019 = vpop.xlane.xlu0 %1018
        %v1020 = vsub.f32 %v1015, %v1019
        %v1021 = vmul.f32 %v1020, 1.442695
        %v1022 = vpow.pop %v1021
        %v1023 = vsel %vm1016, %v1022, 0.0
        %1024 = vadd.xlane.f32.xlu0 %v1023
        %v1025 = vpop.xlane.xlu0 %1024
        %v1026 = vrcp.pop %v1025
        %v1027 = vmul.f32 %v1022, %v1026
        %v1028 = vpack.c.bf16 %v1027, %v1027
        %v1030 = vsel %vm1016, %v1028, 0
        %vm1032 = vcmask 1043456
        %v1034 = vsel %vm1032, %v993, 0
        %1036 = vmatpush.bf16.msra.mxu0 0
        %1037 = vmatpush.bf16.msra.mxu0 0
        %1038 = vmatpush.bf16.msra.mxu0 0
        %1039 = vmatpush.bf16.msra.mxu0 0
        %1040 = vmatpush.bf16.msra.mxu0 0
        %1041 = vmatpush.bf16.msra.mxu0 0
        %1042 = vmatpush.bf16.msra.mxu0 0
        %1043 = vmatpush.bf16.msra.mxu0 %v1034
        %1044 = vmatmul.bf16.gmra.mxu0 %v1030
        %v1045 = vpop.f32.mrf.mxu0
        %v1046 = vadd.f32 0.0, %v1045
        %v1047 = vpop.f32.mrf.mxu0
        %1048 = vdwg.mxu0
        %1049 = vst [vmem:[%s178] sm:$0xff] %v1046
        %s1050 = sand.u32 %s75, 1
        %s1051 = scalar_lea.sflag [#allocation4], %s1050
        %s1052 = sand.u32 %s75, 1
        %s1053 = smul.addr %s1052, 8
        %s1054 = scalar_lea.vmem [#allocation7], %s1053
        // Predicated region
        $region37: #{tpu_custom_call.1} parent=27 // pred_check
          %p1055 = pneg %p85
        $region38: #{tpu_custom_call.1} parent=27 // pred_check_branch
          %1057 = sbr.rel (%p1055) target = $region40
        $region39: #{tpu_custom_call.1} parent=27 // pred_region
          %1059 = vsyncadd %s1051, 0
          %s1060 = smul.addr %s20, 8
          %s1061 = scalar_lea.hbm %s2, %s1060
          %s1063 = sshll.u32 %s1054, 4
          %s1064 = int_to_ptr.vmem [resolvable:$true] %s1063
          %s1065 = sshll.u32 %s1061, 4
          %s1066 = int_to_ptr.hbm [resolvable:$true] %s1065
          %1068 = dma.vmem_to_hbm [thread:$0]  %s1064, 128, %s1066, %s1051
        $region40: #{tpu_custom_call.1} parent=27 // pred_fallthru
          _
      $region28: #{tpu_custom_call.1} parent=5 // pred_fallthru
        _
      %p1069 = scmp.le.s32.totalorder 2, %s15
      // Predicated region
      $region41: #{tpu_custom_call.1} parent=5 // pred_check
        %p1070 = pneg %p1069
      $region42: #{tpu_custom_call.1} parent=5 // pred_check_branch
        %1072 = sbr.rel (%p1070) target = $region44
      $region43: #{tpu_custom_call.1} parent=5 // pred_region
        %s1073 = ssub.s32 %s15, 2
        // Predicated region
        $region45: #{tpu_custom_call.1} parent=43 // pred_check
          %p1074 = pneg %p91
        $region46: #{tpu_custom_call.1} parent=43 // pred_check_branch
          %1076 = sbr.rel (%p1074) target = $region48
        $region47: #{tpu_custom_call.1} parent=43 // pred_region
          %s1077 = sand.u32 %s76, 1
          %s1078 = scalar_lea.sflag [#allocation4], %s1077
          %s1079 = sand.u32 %s76, 1
          %s1080 = smul.addr %s1079, 8
          %s1081 = scalar_lea.vmem [#allocation7], %s1080
          %1083 = dma.done %s1078, 128
        $region48: #{tpu_custom_call.1} parent=43 // pred_fallthru
          _
      $region44: #{tpu_custom_call.1} parent=5 // pred_fallthru
        _
    $region6: #{tpu_custom_call.1} parent=1 // loop_footer
      %s19 = sadd.s32 1, %s15
    $region7: #{tpu_custom_call.1} parent=1 // loop_footer_branch
      %14 = sbr.rel target = $region3
    $region8: #{tpu_custom_call.1} parent=1 // loop_exit
      _
    %1084 = vsyncpa [#allocation3], 1
    %s1085 = scalar_lea.sflag [#allocation3], 1
    %1086 = vsyncpa %s1085, 1
    %1087 = vsyncpa [#allocation6], 1
    %1088 = vsyncpa [#allocation4], 1
    %s1089 = scalar_lea.sflag [#allocation4], 1
    %1090 = vsyncpa %s1089, 1

</llo_original>
